<compile_context>
chip_gen: v5e
topology: v5e:2x2
jax: 0.10.0
libtpu: 0.0.40
codegen_flags: <defaults>
</compile_context>

<pallas_src>
import jax
import jax.numpy as jnp
from jax.experimental import pallas as pl
from jax.experimental.pallas import tpu as pltpu


def _make_lspms_kernel(reassociate, block_k, use_bf16_exp):
    """Build the per-(batch, row-block) kernel body."""

    def _softmax_factors(a_blk, a_bf_full):
        # Score block (TK, N): contraction over C on the MXU (bf16 in, f32 acc).
        s = jax.lax.dot_general(
            a_blk, a_bf_full, (((0,), (0,)), ((), ())),
            preferred_element_type=jnp.float32)                  # (TK, N) f32
        s = s - jnp.max(s, axis=-1, keepdims=True)
        if use_bf16_exp:
            e = jnp.exp(s.astype(jnp.bfloat16))                  # bf16 EUP (v6e/v7x)
        else:
            e = jnp.exp(s)                                       # f32 EUP (v5e)
        # Row-sum in f32; reciprocal on the EUP slot (approx, ~1e-3 rel).
        inv_l = pl.reciprocal(
            jnp.sum(e, axis=-1, dtype=jnp.float32), approx=True)  # (TK,)
        return e.astype(jnp.bfloat16), inv_l

    def _block_start(k):
        start = k * block_k
        if block_k % 128 == 0:
            start = pl.multiple_of(start, 128)
        return start

    if reassociate:
        # refs: xf (C,N) f32, m_fused (C,C) bf16, out (C,N); scratch a_bf, acc(C,N)
        def kernel(xf_ref, m_ref, out_ref, a_bf_ref, acc_ref):
            k = pl.program_id(1)

            @pl.when(k == 0)
            def _init():
                a_bf_ref[...] = xf_ref[...].astype(jnp.bfloat16)
                acc_ref[...] = jnp.zeros_like(acc_ref)

            a_blk = a_bf_ref[:, pl.ds(_block_start(k), block_k)]   # (C, TK) bf16
            e, inv_l = _softmax_factors(a_blk, a_bf_ref[...])

            # q_blk = (GP @ Wconv) @ A[:, blk]; fold 1/rowsum into its columns.
            q_blk = jnp.dot(m_ref[...], a_blk,
                            preferred_element_type=jnp.float32)    # (C, TK) f32
            q_blk = (q_blk * inv_l[None, :]).astype(jnp.bfloat16)

            acc_ref[...] += jnp.dot(q_blk, e,
                                    preferred_element_type=jnp.float32)

            @pl.when(k == pl.num_programs(1) - 1)
            def _finalize():
                out_ref[...] = (acc_ref[...] + xf_ref[...]).astype(out_ref.dtype)

        return kernel

    # refs: xf (C,N) f32, wc (S2,C) bf16, gp (C,S2) f32, out (C,N); scratch a_bf, acc(S2,N)
    def kernel(xf_ref, wc_ref, gp_ref, out_ref, a_bf_ref, acc_ref):
        k = pl.program_id(1)

        @pl.when(k == 0)
        def _init():
            a_bf_ref[...] = xf_ref[...].astype(jnp.bfloat16)
            acc_ref[...] = jnp.zeros_like(acc_ref)

        a_blk = a_bf_ref[:, pl.ds(_block_start(k), block_k)]       # (C, TK) bf16
        e, inv_l = _softmax_factors(a_blk, a_bf_ref[...])

        # q_blk = Wconv @ A[:, blk]; fold 1/rowsum into its columns.
        q_blk = jnp.dot(wc_ref[...], a_blk,
                        preferred_element_type=jnp.float32)        # (S2, TK) f32
        q_blk = (q_blk * inv_l[None, :]).astype(jnp.bfloat16)

        acc_ref[...] += jnp.dot(q_blk, e,
                                preferred_element_type=jnp.float32)

        @pl.when(k == pl.num_programs(1) - 1)
        def _finalize():
            # GP applied exactly once per batch, in f32 (keeps accumulated precision).
            res = jnp.dot(gp_ref[...], acc_ref[...],
                          preferred_element_type=jnp.float32)      # (C, N)
            out_ref[...] = (res + xf_ref[...]).astype(out_ref.dtype)

    return kernel


def _tpu_generation_hints():
    """(use_bf16_exp, vmem_budget_bytes) derived from the local device generation."""
    try:
        kind = jax.devices()[0].device_kind.lower()
    except Exception:
        kind = ""
    is_v7 = "v7" in kind
    is_v6 = "v6" in kind
    older = any(t in kind for t in ("v2", "v3", "v4", "v5"))
    use_bf16_exp = bool(is_v6 or is_v7)          # v5e and older: no bf16 EUP
    if is_v7:
        budget = 44 << 20                         # 64 MiB part, leave headroom
    elif is_v6 or older:
        budget = 100 << 20                        # 128 MiB parts (v5e / v6e)
    else:
        budget = 40 << 20                         # unknown / interpret: conservative
    return use_bf16_exp, budget


def _footprint_bytes(N, C, R, tk, use_bf16_exp):
    """Realistic VMEM footprint for one grid step at row-block size tk."""
    resident = (2 * 4 * C * N        # xf (f32), double buffered
                + 2 * 4 * C * N      # out block (f32), double buffered
                + 2 * C * N          # bf16 copy of A (scratch)
                + 4 * R * N)         # f32 accumulator (scratch)
    per_elem = 4 + (2 if use_bf16_exp else 4)   # live (TK,N) temps: f32 scores + exp tile
    return resident + per_elem * tk * N + (2 << 20)


def _pick_block_k(N, C, R, budget, use_bf16_exp):
    """Largest row-block from the ladder whose footprint fits the VMEM budget."""
    ladder = [t for t in (2048, 1024, 512, 256, 128) if t <= N and N % t == 0]
    if not ladder:
        # TODO(synk): pad N up to a multiple of 128 instead of a full-N score block.
        return N
    for tk in ladder:
        if _footprint_bytes(N, C, R, tk, use_bf16_exp) <= budget:
            return tk
    return ladder[-1]


def lspms_forward(x, w_conv, w_gp, S, block_k=None):
    """x: (B, C, H, W) f32. w_conv: (S*S, C) 1x1-conv weight. w_gp: (C, C)."""
    B, C, H, W = x.shape
    N = H * W
    S2 = S * S
    assert H % S == 0 and W % S == 0, "uniform adaptive pool needs H, W divisible by S"

    reassociate = C <= S2
    R = C if reassociate else S2

    use_bf16_exp, budget = _tpu_generation_hints()
    if block_k is None:
        block_k = _pick_block_k(N, C, R, budget, use_bf16_exp)
    assert N % block_k == 0
    nk = N // block_k
    vmem_limit = int(max(_footprint_bytes(N, C, R, block_k, use_bf16_exp), 16 << 20))

    x_flat = x.reshape(B, C, N)
    # AdaptiveAvgPool2d(S) with H % S == 0 and W % S == 0 is uniform block averaging.
    pooled = x.reshape(B, C, S, H // S, S, W // S).mean(axis=(3, 5)).reshape(B, C, S2)
    gp = jax.nn.relu(jnp.einsum('oc,bcs->bos', w_gp, pooled))          # (B, C, S2) f32

    kernel = _make_lspms_kernel(reassociate, block_k, use_bf16_exp)

    # TODO(synk): on v7x with large C*N, set pipeline_mode=pl.Buffered(1) on the
    # k-invariant xf/out specs (they only rotate at batch boundaries) to drop
    # their second VMEM buffer.
    xf_spec = pl.BlockSpec((None, C, N), lambda b, k: (b, 0, 0))
    out_spec = pl.BlockSpec((None, C, N), lambda b, k: (b, 0, 0))
    scratch = [pltpu.VMEM((C, N), jnp.bfloat16),     # bf16 copy of A
               pltpu.VMEM((R, N), jnp.float32)]      # matmul accumulator

    common = dict(
        out_shape=jax.ShapeDtypeStruct((B, C, N), x.dtype),
        compiler_params=pltpu.CompilerParams(
            dimension_semantics=("parallel", "arbitrary"),
            vmem_limit_bytes=vmem_limit),
    )

    if reassociate:
        # Fuse the entire GP branch into one per-batch (C, C) bf16 matrix.
        m_fused = jnp.einsum('bcs,sk->bck', gp, w_conv).astype(jnp.bfloat16)
        grid_spec = pltpu.PrefetchScalarGridSpec(
            num_scalar_prefetch=0, grid=(B, nk),
            in_specs=[xf_spec,
                      pl.BlockSpec((None, C, C), lambda b, k: (b, 0, 0))],
            out_specs=out_spec,
            scratch_shapes=scratch)
        out_flat = pl.pallas_call(kernel, grid_spec=grid_spec, **common)(
            x_flat, m_fused)
    else:
        grid_spec = pltpu.PrefetchScalarGridSpec(
            num_scalar_prefetch=0, grid=(B, nk),
            in_specs=[xf_spec,
                      pl.BlockSpec((S2, C), lambda b, k: (0, 0)),
                      pl.BlockSpec((None, C, S2), lambda b, k: (b, 0, 0))],
            out_specs=out_spec,
            scratch_shapes=scratch)
        out_flat = pl.pallas_call(kernel, grid_spec=grid_spec, **common)(
            x_flat, w_conv.astype(jnp.bfloat16), gp)

    return out_flat.reshape(B, C, H, W)


def lspms_reference(x, w_conv, w_gp, S):
    """Pure-JAX (f32) reference mirroring the PyTorch forward."""
    B, C, H, W = x.shape
    N = H * W
    a = x.reshape(B, C, N)
    m1 = jnp.einsum('bcn,bcm->bnm', a, a)
    p = jax.nn.softmax(m1, axis=-1)
    xc = jnp.einsum('sc,bcn->bsn', w_conv, a)
    mm2 = jnp.einsum('bsn,bnm->bsm', xc, p)
    pooled = x.reshape(B, C, S, H // S, S, W // S).mean(axis=(3, 5)).reshape(B, C, S * S)
    gp = jax.nn.relu(jnp.einsum('oc,bcs->bos', w_gp, pooled))
    mm3 = jnp.einsum('bcs,bsn->bcn', gp, mm2)
    return (mm3 + a).reshape(B, C, H, W)


if __name__ == "__main__":
    def _run_case(B, C, H, W, S):
        key = jax.random.PRNGKey(0)
        kx, kc, kg = jax.random.split(key, 3)
        x = jax.random.normal(kx, (B, C, H, W), dtype=jnp.float32)
        # Shapes follow nn.Conv2d(..., kernel_size=1, bias=False) weights.
        w_conv = jax.random.normal(kc, (S * S, C), dtype=jnp.float32) * 0.1  # C -> S*S
        w_gp = jax.random.normal(kg, (C, C), dtype=jnp.float32) * 0.1        # C -> C

        out = jax.block_until_ready(lspms_forward(x, w_conv, w_gp, S))
        ref = lspms_reference(x, w_conv, w_gp, S)
        assert out.shape == (B, C, H, W)
        # bf16 MXU operands + approx reciprocal -> looser tolerance than pure f32.
        assert jnp.allclose(out, ref, rtol=5e-2, atol=5e-2), \
            f"mismatch vs reference (B={B}, C={C}, H={H}, W={W}, S={S})"

    # Path 1: C <= S*S -> fused (GP @ Wconv) per-batch matrix, accumulator R = C.
    _run_case(B=2, C=4, H=16, W=16, S=4)
    # Path 2: C > S*S -> per-step Wconv matmul, GP applied once in the finalize.
    _run_case(B=1, C=32, H=16, W=16, S=4)

    print("KERNEL_OK")
</pallas_src>

<mosaic_0001>
module attributes {stable_mosaic.version = 11 : i64} {
  func.func @kernel(%arg0: i32, %arg1: i32, %arg2: memref<1x4x256xf32, #tpu.memory_space<vmem>>, %arg3: memref<1x4x4xbf16, #tpu.memory_space<vmem>>, %arg4: memref<1x4x256xf32, #tpu.memory_space<vmem>>, %arg5: memref<4x256xbf16, #tpu.memory_space<vmem>>, %arg6: memref<4x256xf32, #tpu.memory_space<vmem>>) attributes {dimension_semantics = [#tpu.dimension_semantics<parallel>, #tpu.dimension_semantics<arbitrary>], iteration_bounds = array<i64: 2, 1>, scalar_prefetch = 0 : i64, scratch_operands = 2 : i64, tpu.core_type = #tpu.core_type<tc>, window_params = [{transform_indices = @transform_0, window_bounds = array<i64: 1, 4, 256>}, {transform_indices = @transform_1, window_bounds = array<i64: 1, 4, 4>}, {transform_indices = @transform_2, window_bounds = array<i64: 1, 4, 256>}]} {
    %c0_i32 = arith.constant 0 : i32
    %0 = arith.cmpi eq, %arg1, %c0_i32 : i32
    %1 = arith.extui %0 : i1 to i32
    %c0_i32_0 = arith.constant 0 : i32
    %2 = arith.cmpi ne, %1, %c0_i32_0 : i32
    scf.if %2 {
      %c0_16 = arith.constant 0 : index
      %c0_17 = arith.constant 0 : index
      %c0_18 = arith.constant 0 : index
      %31 = vector.load %arg2[%c0_16, %c0_17, %c0_18] : memref<1x4x256xf32, #tpu.memory_space<vmem>>, vector<1x4x256xf32>
      %32 = vector.shape_cast %31 : vector<1x4x256xf32> to vector<4x256xf32>
      %33 = arith.truncf %32 : vector<4x256xf32> to vector<4x256xbf16>
      %c0_19 = arith.constant 0 : index
      %c0_20 = arith.constant 0 : index
      %34 = vector.load %arg5[%c0_19, %c0_20] : memref<4x256xbf16, #tpu.memory_space<vmem>>, vector<4x256xbf16>
      tpu.vector_store %arg5[%c0_19, %c0_20], %33 {strides = array<i32>} : memref<4x256xbf16, #tpu.memory_space<vmem>>, vector<4x256xbf16>,
      %cst_21 = arith.constant 0.000000e+00 : f32
      %35 = vector.broadcast %cst_21 : f32 to vector<4x256xf32>
      %c0_22 = arith.constant 0 : index
      %c0_23 = arith.constant 0 : index
      %36 = vector.load %arg6[%c0_22, %c0_23] : memref<4x256xf32, #tpu.memory_space<vmem>>, vector<4x256xf32>
      tpu.vector_store %arg6[%c0_22, %c0_23], %35 {strides = array<i32>} : memref<4x256xf32, #tpu.memory_space<vmem>>, vector<4x256xf32>,
    } else {
    }
    %c256_i32 = arith.constant 256 : i32
    %3 = arith.muli %arg1, %c256_i32 : i32
    %4 = tpu.assume_multiple %3, 128 : i32
    %c0 = arith.constant 0 : index
    %5 = arith.index_cast %4 : i32 to index
    %6 = vector.load %arg5[%c0, %5] : memref<4x256xbf16, #tpu.memory_space<vmem>>, vector<4x256xbf16>
    %c0_1 = arith.constant 0 : index
    %c0_2 = arith.constant 0 : index
    %7 = vector.load %arg5[%c0_1, %c0_2] : memref<4x256xbf16, #tpu.memory_space<vmem>>, vector<4x256xbf16>
    %cst = arith.constant dense<0.000000e+00> : vector<256x256xf32>
    %8 = tpu.matmul %6, %7, %cst {dimension_numbers = #tpu.dot_dimension_numbers<[0], [0], [1], [1], [0, 1, 1, 1], [], []>} : vector<4x256xbf16>, vector<4x256xbf16>, vector<256x256xf32> -> vector<256x256xf32>
    %cst_3 = arith.constant dense<0xFF800000> : vector<256xf32>
    %9 = vector.multi_reduction <maximumf>, %8, %cst_3 [1] : vector<256x256xf32> to vector<256xf32>
    %10 = vector.shape_cast %9 : vector<256xf32> to vector<256x1xf32>
    %11 = vector.broadcast %10 : vector<256x1xf32> to vector<256x256xf32>
    %12 = arith.subf %8, %11 : vector<256x256xf32>
    %13 = math.exp %12 : vector<256x256xf32>
    %cst_4 = arith.constant dense<0.000000e+00> : vector<256xf32>
    %14 = vector.multi_reduction <add>, %13, %cst_4 [1] : vector<256x256xf32> to vector<256xf32>
    %15 = tpu.reciprocal %14 {approx = true} : vector<256xf32> -> vector<256xf32>
    %16 = arith.truncf %13 : vector<256x256xf32> to vector<256x256xbf16>
    %c0_5 = arith.constant 0 : index
    %c0_6 = arith.constant 0 : index
    %c0_7 = arith.constant 0 : index
    %17 = vector.load %arg3[%c0_5, %c0_6, %c0_7] : memref<1x4x4xbf16, #tpu.memory_space<vmem>>, vector<1x4x4xbf16>
    %18 = vector.shape_cast %17 : vector<1x4x4xbf16> to vector<4x4xbf16>
    %cst_8 = arith.constant dense<0.000000e+00> : vector<4x256xf32>
    %19 = tpu.matmul %18, %6, %cst_8 {dimension_numbers = #tpu.dot_dimension_numbers<[1], [0], [0], [1], [0, 0, 1, 1], [], []>} : vector<4x4xbf16>, vector<4x256xbf16>, vector<4x256xf32> -> vector<4x256xf32>
    %20 = vector.shape_cast %15 : vector<256xf32> to vector<1x256xf32>
    %21 = vector.broadcast %20 : vector<1x256xf32> to vector<4x256xf32>
    %22 = arith.mulf %19, %21 : vector<4x256xf32>
    %23 = arith.truncf %22 : vector<4x256xf32> to vector<4x256xbf16>
    %c0_9 = arith.constant 0 : index
    %c0_10 = arith.constant 0 : index
    %24 = vector.load %arg6[%c0_9, %c0_10] : memref<4x256xf32, #tpu.memory_space<vmem>>, vector<4x256xf32>
    %cst_11 = arith.constant dense<0.000000e+00> : vector<4x256xf32>
    %25 = tpu.matmul %23, %16, %cst_11 {dimension_numbers = #tpu.dot_dimension_numbers<[1], [0], [0], [1], [0, 0, 1, 1], [], []>} : vector<4x256xbf16>, vector<256x256xbf16>, vector<4x256xf32> -> vector<4x256xf32>
    %26 = arith.addf %24, %25 : vector<4x256xf32>
    %c0_12 = arith.constant 0 : index
    %c0_13 = arith.constant 0 : index
    %27 = vector.load %arg6[%c0_12, %c0_13] : memref<4x256xf32, #tpu.memory_space<vmem>>, vector<4x256xf32>
    tpu.vector_store %arg6[%c0_12, %c0_13], %26 {strides = array<i32>} : memref<4x256xf32, #tpu.memory_space<vmem>>, vector<4x256xf32>,
    %c0_i32_14 = arith.constant 0 : i32
    %28 = arith.cmpi eq, %arg1, %c0_i32_14 : i32
    %29 = arith.extui %28 : i1 to i32
    %c0_i32_15 = arith.constant 0 : i32
    %30 = arith.cmpi ne, %29, %c0_i32_15 : i32
    scf.if %30 {
      %c0_16 = arith.constant 0 : index
      %c0_17 = arith.constant 0 : index
      %31 = vector.load %arg6[%c0_16, %c0_17] : memref<4x256xf32, #tpu.memory_space<vmem>>, vector<4x256xf32>
      %c0_18 = arith.constant 0 : index
      %c0_19 = arith.constant 0 : index
      %c0_20 = arith.constant 0 : index
      %32 = vector.load %arg2[%c0_18, %c0_19, %c0_20] : memref<1x4x256xf32, #tpu.memory_space<vmem>>, vector<1x4x256xf32>
      %33 = vector.shape_cast %32 : vector<1x4x256xf32> to vector<4x256xf32>
      %34 = arith.addf %31, %33 : vector<4x256xf32>
      %c0_21 = arith.constant 0 : index
      %c0_22 = arith.constant 0 : index
      %c0_23 = arith.constant 0 : index
      %35 = vector.load %arg4[%c0_21, %c0_22, %c0_23] : memref<1x4x256xf32, #tpu.memory_space<vmem>>, vector<1x4x256xf32>
      %36 = vector.shape_cast %35 : vector<1x4x256xf32> to vector<4x256xf32>
      %37 = vector.shape_cast %34 : vector<4x256xf32> to vector<1x4x256xf32>
      tpu.vector_store %arg4[%c0_21, %c0_22, %c0_23], %37 {strides = array<i32>} : memref<1x4x256xf32, #tpu.memory_space<vmem>>, vector<1x4x256xf32>,
    } else {
    }
    return
  }
  func.func @transform_0(%arg0: i32, %arg1: i32) -> (i32, i32, i32) {
    %c0_i32 = arith.constant 0 : i32
    %c0_i32_0 = arith.constant 0 : i32
    %c0_i32_1 = arith.constant 0 : i32
    return %arg0, %c0_i32, %c0_i32_0 : i32, i32, i32
  }
  func.func @transform_1(%arg0: i32, %arg1: i32) -> (i32, i32, i32) {
    %c0_i32 = arith.constant 0 : i32
    %c0_i32_0 = arith.constant 0 : i32
    %c0_i32_1 = arith.constant 0 : i32
    return %arg0, %c0_i32, %c0_i32_0 : i32, i32, i32
  }
  func.func @transform_2(%arg0: i32, %arg1: i32) -> (i32, i32, i32) {
    %c0_i32 = arith.constant 0 : i32
    %c0_i32_0 = arith.constant 0 : i32
    %c0_i32_1 = arith.constant 0 : i32
    return %arg0, %c0_i32, %c0_i32_0 : i32, i32, i32
  }
}

</mosaic_0001>

<llo_original>
// kernel: tpu_custom_call.1
$region0: #{tpu_custom_call.1}
  #allocation0 [shape = 'u32[]', space=smem, size = 0x4, offset = 0x4, fixed_abs, tag = 'smem constant byte address 0x4 - core index']
  #allocation1 [shape = 'u32[72,128]{1,0:T(1,128)}', space=vmem, size = 0x9000, scoped, tag = 'internal scratch']
  #allocation2 [shape = 'bf16[4,256]{1,0:T(4,128)(2,1)}', space=vmem, size = 0x800, scoped, tag = 'scratch operand']
  #allocation3 [shape = 'f32[4,256]{1,0:T(4,128)}', space=vmem, size = 0x1000, scoped, tag = 'scratch operand']
  %s0 = inlined_call_operand.hbm [shape: f32[2,4,256], index: 0, kind: input, shape index: {}]
  %s1 = inlined_call_operand.hbm [shape: bf16[2,4,4], index: 1, kind: input, shape index: {}]
  %s2 = inlined_call_operand.hbm [shape: f32[2,4,256], index: 2, kind: output, shape index: {}]
  %s3 = sld [smem:[#allocation0]]
  $region57: #{tpu_custom_call.1} parent=0
    _
  %s5 = ssub.s32 1, %s3
  %s6 = scalar_select 0, %s5, %s3
  $region1: #{tpu_custom_call.1} parent=0
    #allocation4 [shape = 'u8[8192]{0}', space=vmem, size = 0x2000, scoped, tag = 'input window, operand 0']
    #allocation5 [shape = 's32[2]{0}', space=sflag, size = 0x8, scoped, tag = 'scoped memory for tpu_custom_call.1']
    #allocation6 [shape = 's32[2]{0}', space=sflag, size = 0x8, scoped, tag = 'scoped memory for tpu_custom_call.1']
    #allocation7 [shape = 'u8[2048]{0}', space=vmem, size = 0x800, scoped, tag = 'input window, operand 1']
    #allocation8 [shape = 's32[2]{0}', space=sflag, size = 0x8, scoped, tag = 'scoped memory for tpu_custom_call.1']
    #allocation9 [shape = 'u8[8192]{0}', space=vmem, size = 0x2000, scoped, tag = 'output window, operand 0']
    %7 = vsyncpa [#allocation5], 0
    %s8 = scalar_lea.sflag [#allocation5], 1
    %9 = vsyncpa %s8, 0
    %10 = vsyncpa [#allocation8], 0
    %s11 = scalar_lea.sflag [#allocation8], 1
    %12 = vsyncpa %s11, 0
    %13 = vsyncpa [#allocation6], 0
    %s14 = scalar_lea.sflag [#allocation6], 1
    %15 = vsyncpa %s14, 0
    loop: start=0, step=1, limit=4
    $region2: #{tpu_custom_call.1} parent=1 // loop_pre_header
      _
    $region3: #{tpu_custom_call.1} parent=1 // loop_header
      %s17 = sphi 0, %s21
      %p18 = scmp.ge.s32.totalorder %s17, 4
      %s24 = sphi 0, %s36
      %s25 = sphi 0, %s32
      %s26 = sphi 0, %s24
      %s27 = sphi 0, %s25
      %s28 = sphi 0, %s26
      %s29 = sphi 0, %s27
      %s39 = sphi 0, %s41
      %s42 = sphi 0, %s39
      %s43 = sphi 0, %s42
      %s59 = sphi 0, %s43
      %s65 = sphi 0, %s67
      %s68 = sphi 0, %s65
      %s69 = sphi 0, %s68
      %s85 = sphi 0, %s69
      %s91 = sphi 0, %s93
      %s94 = sphi 0, %s91
      %s95 = sphi 0, %s94
      %s111 = sphi 0, %s95
    $region4: #{tpu_custom_call.1} parent=1 // loop_header_branch
      %20 = sbr.rel (%p18) target = $region8
    $region5: #{tpu_custom_call.1} parent=1 // loop_body
      %s22 = ssub.s32 %s17, 1
      %s23 = ssub.s32 %s17, 2
      %s30 = sadd.s32 1, %s25
      %p31 = scmp.ge.s32.totalorder %s30, 1
      %s32 = scalar_select %p31, 0, %s30
      %s33 = sadd.s32 1, %s24
      %s34 = scalar_select %p31, %s33, %s24
      %p35 = scmp.ge.s32.totalorder %s34, 2
      %s36 = scalar_select %p35, 0, %s34
      %s37 = ssub.s32 %s24, %s36
      %p38 = scmp.eq.s32.totalorder %s37, 0
      %s40 = sadd.s32 %s39, 1
      %s41 = scalar_select %p38, %s39, %s40
      %p44 = pneg %p38
      %p45 = scmp.eq.s32.totalorder %s17, 1
      %p46 = por %p44, %p45
      %p47 = scmp.ne.s32.totalorder %s39, %s42
      %p48 = scmp.eq.s32.totalorder %s17, 0
      %p49 = por %p47, %p48
      %p50 = scmp.ne.s32.totalorder %s39, %s42
      %p51 = scmp.eq.s32.totalorder %s22, 1
      %p52 = por %p50, %p51
      %p53 = scmp.ne.s32.totalorder %s42, %s43
      %p54 = scmp.eq.s32.totalorder %s22, 0
      %p55 = por %p53, %p54
      %p56 = scmp.ne.s32.totalorder %s42, %s43
      %p57 = scmp.eq.s32.totalorder %s23, 1
      %p58 = por %p56, %p57
      %p60 = scmp.ne.s32.totalorder %s43, %s59
      %p61 = scmp.eq.s32.totalorder %s23, 0
      %p62 = por %p60, %p61
      %s63 = ssub.s32 %s24, %s36
      %p64 = scmp.eq.s32.totalorder %s63, 0
      %s66 = sadd.s32 %s65, 1
      %s67 = scalar_select %p64, %s65, %s66
      %p70 = pneg %p64
      %p71 = scmp.eq.s32.totalorder %s17, 1
      %p72 = por %p70, %p71
      %p73 = scmp.ne.s32.totalorder %s65, %s68
      %p74 = scmp.eq.s32.totalorder %s17, 0
      %p75 = por %p73, %p74
      %p76 = scmp.ne.s32.totalorder %s65, %s68
      %p77 = scmp.eq.s32.totalorder %s22, 1
      %p78 = por %p76, %p77
      %p79 = scmp.ne.s32.totalorder %s68, %s69
      %p80 = scmp.eq.s32.totalorder %s22, 0
      %p81 = por %p79, %p80
      %p82 = scmp.ne.s32.totalorder %s68, %s69
      %p83 = scmp.eq.s32.totalorder %s23, 1
      %p84 = por %p82, %p83
      %p86 = scmp.ne.s32.totalorder %s69, %s85
      %p87 = scmp.eq.s32.totalorder %s23, 0
      %p88 = por %p86, %p87
      %s89 = ssub.s32 %s24, %s36
      %p90 = scmp.eq.s32.totalorder %s89, 0
      %s92 = sadd.s32 %s91, 1
      %s93 = scalar_select %p90, %s91, %s92
      %p96 = pneg %p90
      %p97 = scmp.eq.s32.totalorder %s17, 1
      %p98 = por %p96, %p97
      %p99 = scmp.ne.s32.totalorder %s91, %s94
      %p100 = scmp.eq.s32.totalorder %s17, 0
      %p101 = por %p99, %p100
      %p102 = scmp.ne.s32.totalorder %s91, %s94
      %p103 = scmp.eq.s32.totalorder %s22, 1
      %p104 = por %p102, %p103
      %p105 = scmp.ne.s32.totalorder %s94, %s95
      %p106 = scmp.eq.s32.totalorder %s22, 0
      %p107 = por %p105, %p106
      %p108 = scmp.ne.s32.totalorder %s94, %s95
      %p109 = scmp.eq.s32.totalorder %s23, 1
      %p110 = por %p108, %p109
      %p112 = scmp.ne.s32.totalorder %s95, %s111
      %p113 = scmp.eq.s32.totalorder %s23, 0
      %p114 = por %p112, %p113
      %p115 = scmp.le.s32.totalorder 1, %s17
      %p116 = scmp.lt.s32.totalorder %s17, 3
      %p117 = pnand %p115, %p116
      %p118 = pneg %p117
      // Predicated region
      $region9: #{tpu_custom_call.1} parent=5 // pred_check
        _
      $region10: #{tpu_custom_call.1} parent=5 // pred_check_branch
        %120 = sbr.rel (%p117) target = $region12
      $region11: #{tpu_custom_call.1} parent=5 // pred_region
        %s121 = ssub.s32 %s17, 1
      $region12: #{tpu_custom_call.1} parent=5 // pred_fallthru
        _
      %p122 = scmp.lt.s32.totalorder %s17, 2
      // Predicated region
      $region13: #{tpu_custom_call.1} parent=5 // pred_check
        %p123 = pneg %p122
      $region14: #{tpu_custom_call.1} parent=5 // pred_check_branch
        %125 = sbr.rel (%p123) target = $region16
      $region15: #{tpu_custom_call.1} parent=5 // pred_region
        // Predicated region
        $region17: #{tpu_custom_call.1} parent=15 // pred_check
          %p126 = pneg %p49
        $region18: #{tpu_custom_call.1} parent=15 // pred_check_branch
          %128 = sbr.rel (%p126) target = $region20
        $region19: #{tpu_custom_call.1} parent=15 // pred_region
          %s129 = sand.u32 %s39, 1
          %s130 = scalar_lea.sflag [#allocation5], %s129
          %s131 = sand.u32 %s39, 1
          %s132 = smul.addr %s131, 8
          %s133 = scalar_lea.vmem [#allocation4], %s132
          %135 = vsyncadd %s130, 0
          %s136 = smul.addr %s24, 2
          %s137 = smul.addr %s136, 4
          %s138 = scalar_lea.hbm %s0, %s137
          %s140 = sshll.u32 %s138, 4
          %s141 = int_to_ptr.hbm [resolvable:$true] %s140
          %s142 = sshll.u32 %s133, 4
          %s143 = int_to_ptr.vmem [resolvable:$true] %s142
          %145 = dma.hbm_to_vmem [thread:$0]  %s141, 128, %s143, %s130
        $region20: #{tpu_custom_call.1} parent=15 // pred_fallthru
          _
        // Predicated region
        $region21: #{tpu_custom_call.1} parent=15 // pred_check
          %p146 = pneg %p75
        $region22: #{tpu_custom_call.1} parent=15 // pred_check_branch
          %148 = sbr.rel (%p146) target = $region24
        $region23: #{tpu_custom_call.1} parent=15 // pred_region
          %s149 = sand.u32 %s65, 1
          %s150 = scalar_lea.sflag [#allocation8], %s149
          %s151 = sand.u32 %s65, 1
          %s152 = smul.addr %s151, 2
          %s153 = scalar_lea.vmem [#allocation7], %s152
          %155 = vsyncadd %s150, 0
          %s156 = smul.addr %s24, 2
          %s157 = scalar_lea.hbm %s1, %s156
          %s159 = sshll.u32 %s157, 4
          %s160 = int_to_ptr.hbm [resolvable:$true] %s159
          %s161 = sshll.u32 %s153, 4
          %s162 = int_to_ptr.vmem [resolvable:$true] %s161
          %164 = dma.hbm_to_vmem [thread:$0]  %s160, 32, %s162, %s150
        $region24: #{tpu_custom_call.1} parent=15 // pred_fallthru
          _
      $region16: #{tpu_custom_call.1} parent=5 // pred_fallthru
        _
      %p165 = scmp.le.s32.totalorder 1, %s17
      %p166 = scmp.lt.s32.totalorder %s17, 3
      %p167 = pnand %p165, %p166
      %p168 = pneg %p167
      // Predicated region
      $region25: #{tpu_custom_call.1} parent=5 // pred_check
        _
      $region26: #{tpu_custom_call.1} parent=5 // pred_check_branch
        %170 = sbr.rel (%p167) target = $region28
      $region27: #{tpu_custom_call.1} parent=5 // pred_region
        %s171 = ssub.s32 %s17, 1
        %s172 = sand.u32 %s42, 1
        %s173 = scalar_lea.sflag [#allocation5], %s172
        %s174 = sand.u32 %s42, 1
        %s175 = smul.addr %s174, 8
        %s176 = scalar_lea.vmem [#allocation4], %s175
        // Predicated region
        $region29: #{tpu_custom_call.1} parent=27 // pred_check
          %p177 = pneg %p55
        $region30: #{tpu_custom_call.1} parent=27 // pred_check_branch
          %179 = sbr.rel (%p177) target = $region32
        $region31: #{tpu_custom_call.1} parent=27 // pred_region
          %181 = dma.done %s173, 128
        $region32: #{tpu_custom_call.1} parent=27 // pred_fallthru
          _
        %s182 = sand.u32 %s68, 1
        %s183 = scalar_lea.sflag [#allocation8], %s182
        %s184 = sand.u32 %s68, 1
        %s185 = smul.addr %s184, 2
        %s186 = scalar_lea.vmem [#allocation7], %s185
        // Predicated region
        $region33: #{tpu_custom_call.1} parent=27 // pred_check
          %p187 = pneg %p81
        $region34: #{tpu_custom_call.1} parent=27 // pred_check_branch
          %189 = sbr.rel (%p187) target = $region36
        $region35: #{tpu_custom_call.1} parent=27 // pred_region
          %191 = dma.done %s183, 32
        $region36: #{tpu_custom_call.1} parent=27 // pred_fallthru
          _
        %s192 = sand.u32 %s42, 1
        %s193 = scalar_lea.sflag [#allocation5], %s192
        %s194 = sand.u32 %s42, 1
        %s195 = smul.addr %s194, 8
        %s196 = scalar_lea.vmem [#allocation4], %s195
        %p197 = pneg %p55
        %p198 = pneg %p52
        %s199 = sand.u32 %s68, 1
        %s200 = scalar_lea.sflag [#allocation8], %s199
        %s201 = sand.u32 %s68, 1
        %s202 = smul.addr %s201, 2
        %s203 = scalar_lea.vmem [#allocation7], %s202
        %p204 = pneg %p81
        %p205 = pneg %p78
        %p206 = pneg %p107
        %p207 = pneg %p104
        %s208 = sand.u32 %s94, 1
        %s209 = scalar_lea.sflag [#allocation6], %s208
        %s210 = sand.u32 %s94, 1
        %s211 = smul.addr %s210, 8
        %s212 = scalar_lea.vmem [#allocation9], %s211
        %p214 = scmp.eq.s32.totalorder %s27, 0
        // Predicated region
        $region37: #{tpu_custom_call.1} parent=27 // pred_check
          %p215 = pneg %p214
        $region38: #{tpu_custom_call.1} parent=27 // pred_check_branch
          %217 = sbr.rel (%p215) target = $region40
        $region39: #{tpu_custom_call.1} parent=27 // pred_region
          %v218 = vld [vmem:[%s176] sm:$0xff]
          %220 = vst [vmem:[#allocation1] ss:$2 sm:$0xff] %v218
          %v221 = vld.sshfl [vmem:[#allocation1] sm:$0xff pattern:$0x75316420]
          %v222 = vld.sshfl [vmem:[#allocation1 + $0x8] sm:$0xff pattern:$0x75316420]
          %v225 = vpack.c.bf16 %v222, %v221
          %v227 = vrot.slane %v225, 2
          %vm228 = vcmask 1041408
          %v231 = vsel %vm228, %v225, %v227
          %233 = vst [vmem:[#allocation2] sm:$0xf] %v231
          %234 = vst [vmem:[#allocation3] sm:$0xff] 0.0
        $region40: #{tpu_custom_call.1} parent=27 // pred_fallthru
          _
        %s235 = smul.u32 %s27, 256
        %s236 = sshra.s32 %s235, 7
        %s237 = sand.u32 %s235, 127
        %s238 = smul.addr %s236, 2
        %s239 = scalar_lea.vmem [#allocation2], %s238
        %v240 = vld [vmem:[%s239] sm:$0xf]
        %v241 = vld [vmem:[#allocation2] sm:$0xf]
        %243 = vst [vmem:[#allocation1] ss:$4 sm:$0xff] %v240
        %v244 = vld.sshfl [vmem:[#allocation1] sm:$0xff pattern:$0x73625140]
        %v245 = vld.sshfl [vmem:[#allocation1 + $0x8] sm:$0xff pattern:$0x73625140]
        %248 = vxpose.binary.xlu0.c.b16.start [1/16] %v245, %v244, 128
        %249 = vxpose.binary.xlu0.c.b16.cont [2/16] 0, 0, 128
        %250 = vxpose.binary.xlu0.c.b16.cont [3/16] 0, 0, 128
        %251 = vxpose.binary.xlu0.c.b16.cont [4/16] 0, 0, 128
        %252 = vxpose.binary.xlu0.c.b16.cont [5/16] 0, 0, 128
        %253 = vxpose.binary.xlu0.c.b16.cont [6/16] 0, 0, 128
        %254 = vxpose.binary.xlu0.c.b16.cont [7/16] 0, 0, 128
        %255 = vxpose.binary.xlu0.c.b16.end [8/16] 0, 0, 128
        %v256 = vpop.trf.xlu0
        %v257 = vpop.trf.xlu0
        %v258 = vpop.trf.xlu0
        %v259 = vpop.trf.xlu0
        %v260 = vpop.trf.xlu0
        %v261 = vpop.trf.xlu0
        %v262 = vpop.trf.xlu0
        %v263 = vpop.trf.xlu0
        %v264 = vpop.trf.xlu0
        %v265 = vpop.trf.xlu0
        %v266 = vpop.trf.xlu0
        %v267 = vpop.trf.xlu0
        %v268 = vpop.trf.xlu0
        %v269 = vpop.trf.xlu0
        %v270 = vpop.trf.xlu0
        %v271 = vpop.trf.xlu0
        %273 = vst [vmem:[#allocation1] ss:$4 sm:$0xff] %v241
        %v274 = vld.sshfl [vmem:[#allocation1] sm:$0xff pattern:$0x73625140]
        %v275 = vld.sshfl [vmem:[#allocation1 + $0x8] sm:$0xff pattern:$0x73625140]
        %vm276 = vcmask 31744
        %v278 = vsel %vm276, %v256, 0
        %v281 = vsel %vm276, %v258, 0
        %v284 = vsel %vm276, %v260, 0
        %v287 = vsel %vm276, %v262, 0
        %v290 = vsel %vm276, %v264, 0
        %v293 = vsel %vm276, %v266, 0
        %v296 = vsel %vm276, %v268, 0
        %v299 = vsel %vm276, %v270, 0
        %v302 = vsel %vm276, %v257, 0
        %v305 = vsel %vm276, %v259, 0
        %v308 = vsel %vm276, %v261, 0
        %v311 = vsel %vm276, %v263, 0
        %v314 = vsel %vm276, %v265, 0
        %v317 = vsel %vm276, %v267, 0
        %v320 = vsel %vm276, %v269, 0
        %v323 = vsel %vm276, %v271, 0
        %vm325 = vcmask 1041408
        %v326 = vsel %vm325, %v274, 0
        %v328 = vsel %vm325, %v275, 0
        %330 = vmatpush.bf16.msra.mxu0 0
        %331 = vmatpush.bf16.msra.mxu0 0
        %332 = vmatpush.bf16.msra.mxu0 0
        %333 = vmatpush.bf16.msra.mxu0 0
        %334 = vmatpush.bf16.msra.mxu0 0
        %335 = vmatpush.bf16.msra.mxu0 0
        %336 = vmatpush.bf16.msra.mxu0 0
        %337 = vmatpush.bf16.msra.mxu0 %v326
        %338 = vmatmul.bf16.gmra.mxu0 %v278
        %v339 = vpop.f32.mrf.mxu0
        %v340 = vadd.f32 0.0, %v339
        %v341 = vpop.f32.mrf.mxu0
        %v342 = vadd.f32 0.0, %v341
        %343 = vmatmul.bf16.gmra.mxu0 %v281
        %v344 = vpop.f32.mrf.mxu0
        %v345 = vadd.f32 0.0, %v344
        %v346 = vpop.f32.mrf.mxu0
        %v347 = vadd.f32 0.0, %v346
        %348 = vmatmul.bf16.gmra.mxu0 %v284
        %v349 = vpop.f32.mrf.mxu0
        %v350 = vadd.f32 0.0, %v349
        %v351 = vpop.f32.mrf.mxu0
        %v352 = vadd.f32 0.0, %v351
        %353 = vmatmul.bf16.gmra.mxu0 %v287
        %v354 = vpop.f32.mrf.mxu0
        %v355 = vadd.f32 0.0, %v354
        %v356 = vpop.f32.mrf.mxu0
        %v357 = vadd.f32 0.0, %v356
        %358 = vmatmul.bf16.gmra.mxu0 %v290
        %v359 = vpop.f32.mrf.mxu0
        %v360 = vadd.f32 0.0, %v359
        %v361 = vpop.f32.mrf.mxu0
        %v362 = vadd.f32 0.0, %v361
        %363 = vmatmul.bf16.gmra.mxu0 %v293
        %v364 = vpop.f32.mrf.mxu0
        %v365 = vadd.f32 0.0, %v364
        %v366 = vpop.f32.mrf.mxu0
        %v367 = vadd.f32 0.0, %v366
        %368 = vmatmul.bf16.gmra.mxu0 %v296
        %v369 = vpop.f32.mrf.mxu0
        %v370 = vadd.f32 0.0, %v369
        %v371 = vpop.f32.mrf.mxu0
        %v372 = vadd.f32 0.0, %v371
        %373 = vmatmul.bf16.gmra.mxu0 %v299
        %v374 = vpop.f32.mrf.mxu0
        %v375 = vadd.f32 0.0, %v374
        %v376 = vpop.f32.mrf.mxu0
        %v377 = vadd.f32 0.0, %v376
        %378 = vmatmul.bf16.gmra.mxu0 %v302
        %v379 = vpop.f32.mrf.mxu0
        %v380 = vadd.f32 0.0, %v379
        %v381 = vpop.f32.mrf.mxu0
        %v382 = vadd.f32 0.0, %v381
        %383 = vmatmul.bf16.gmra.mxu0 %v305
        %v384 = vpop.f32.mrf.mxu0
        %v385 = vadd.f32 0.0, %v384
        %v386 = vpop.f32.mrf.mxu0
        %v387 = vadd.f32 0.0, %v386
        %388 = vmatmul.bf16.gmra.mxu0 %v308
        %v389 = vpop.f32.mrf.mxu0
        %v390 = vadd.f32 0.0, %v389
        %v391 = vpop.f32.mrf.mxu0
        %v392 = vadd.f32 0.0, %v391
        %393 = vmatmul.bf16.gmra.mxu0 %v311
        %v394 = vpop.f32.mrf.mxu0
        %v395 = vadd.f32 0.0, %v394
        %v396 = vpop.f32.mrf.mxu0
        %v397 = vadd.f32 0.0, %v396
        %398 = vmatmul.bf16.gmra.mxu0 %v314
        %v399 = vpop.f32.mrf.mxu0
        %v400 = vadd.f32 0.0, %v399
        %v401 = vpop.f32.mrf.mxu0
        %v402 = vadd.f32 0.0, %v401
        %403 = vmatmul.bf16.gmra.mxu0 %v317
        %v404 = vpop.f32.mrf.mxu0
        %v405 = vadd.f32 0.0, %v404
        %v406 = vpop.f32.mrf.mxu0
        %v407 = vadd.f32 0.0, %v406
        %408 = vmatmul.bf16.gmra.mxu0 %v320
        %v409 = vpop.f32.mrf.mxu0
        %v410 = vadd.f32 0.0, %v409
        %v411 = vpop.f32.mrf.mxu0
        %v412 = vadd.f32 0.0, %v411
        %413 = vmatmul.bf16.gmra.mxu0 %v323
        %v414 = vpop.f32.mrf.mxu0
        %v415 = vadd.f32 0.0, %v414
        %v416 = vpop.f32.mrf.mxu0
        %v417 = vadd.f32 0.0, %v416
        %418 = vdwg.mxu0
        %419 = vmatpush.bf16.msra.mxu0 0
        %420 = vmatpush.bf16.msra.mxu0 0
        %421 = vmatpush.bf16.msra.mxu0 0
        %422 = vmatpush.bf16.msra.mxu0 0
        %423 = vmatpush.bf16.msra.mxu0 0
        %424 = vmatpush.bf16.msra.mxu0 0
        %425 = vmatpush.bf16.msra.mxu0 0
        %426 = vmatpush.bf16.msra.mxu0 %v328
        %427 = vmatmul.bf16.gmra.mxu0 %v278
        %v428 = vpop.f32.mrf.mxu0
        %v429 = vadd.f32 0.0, %v428
        %v430 = vpop.f32.mrf.mxu0
        %v431 = vadd.f32 0.0, %v430
        %432 = vmatmul.bf16.gmra.mxu0 %v281
        %v433 = vpop.f32.mrf.mxu0
        %v434 = vadd.f32 0.0, %v433
        %v435 = vpop.f32.mrf.mxu0
        %v436 = vadd.f32 0.0, %v435
        %437 = vmatmul.bf16.gmra.mxu0 %v284
        %v438 = vpop.f32.mrf.mxu0
        %v439 = vadd.f32 0.0, %v438
        %v440 = vpop.f32.mrf.mxu0
        %v441 = vadd.f32 0.0, %v440
        %442 = vmatmul.bf16.gmra.mxu0 %v287
        %v443 = vpop.f32.mrf.mxu0
        %v444 = vadd.f32 0.0, %v443
        %v445 = vpop.f32.mrf.mxu0
        %v446 = vadd.f32 0.0, %v445
        %447 = vmatmul.bf16.gmra.mxu0 %v290
        %v448 = vpop.f32.mrf.mxu0
        %v449 = vadd.f32 0.0, %v448
        %v450 = vpop.f32.mrf.mxu0
        %v451 = vadd.f32 0.0, %v450
        %452 = vmatmul.bf16.gmra.mxu0 %v293
        %v453 = vpop.f32.mrf.mxu0
        %v454 = vadd.f32 0.0, %v453
        %v455 = vpop.f32.mrf.mxu0
        %v456 = vadd.f32 0.0, %v455
        %457 = vmatmul.bf16.gmra.mxu0 %v296
        %v458 = vpop.f32.mrf.mxu0
        %v459 = vadd.f32 0.0, %v458
        %v460 = vpop.f32.mrf.mxu0
        %v461 = vadd.f32 0.0, %v460
        %462 = vmatmul.bf16.gmra.mxu0 %v299
        %v463 = vpop.f32.mrf.mxu0
        %v464 = vadd.f32 0.0, %v463
        %v465 = vpop.f32.mrf.mxu0
        %v466 = vadd.f32 0.0, %v465
        %467 = vmatmul.bf16.gmra.mxu0 %v302
        %v468 = vpop.f32.mrf.mxu0
        %v469 = vadd.f32 0.0, %v468
        %v470 = vpop.f32.mrf.mxu0
        %v471 = vadd.f32 0.0, %v470
        %472 = vmatmul.bf16.gmra.mxu0 %v305
        %v473 = vpop.f32.mrf.mxu0
        %v474 = vadd.f32 0.0, %v473
        %v475 = vpop.f32.mrf.mxu0
        %v476 = vadd.f32 0.0, %v475
        %477 = vmatmul.bf16.gmra.mxu0 %v308
        %v478 = vpop.f32.mrf.mxu0
        %v479 = vadd.f32 0.0, %v478
        %v480 = vpop.f32.mrf.mxu0
        %v481 = vadd.f32 0.0, %v480
        %482 = vmatmul.bf16.gmra.mxu0 %v311
        %v483 = vpop.f32.mrf.mxu0
        %v484 = vadd.f32 0.0, %v483
        %v485 = vpop.f32.mrf.mxu0
        %v486 = vadd.f32 0.0, %v485
        %487 = vmatmul.bf16.gmra.mxu0 %v314
        %v488 = vpop.f32.mrf.mxu0
        %v489 = vadd.f32 0.0, %v488
        %v490 = vpop.f32.mrf.mxu0
        %v491 = vadd.f32 0.0, %v490
        %492 = vmatmul.bf16.gmra.mxu0 %v317
        %v493 = vpop.f32.mrf.mxu0
        %v494 = vadd.f32 0.0, %v493
        %v495 = vpop.f32.mrf.mxu0
        %v496 = vadd.f32 0.0, %v495
        %497 = vmatmul.bf16.gmra.mxu0 %v320
        %v498 = vpop.f32.mrf.mxu0
        %v499 = vadd.f32 0.0, %v498
        %v500 = vpop.f32.mrf.mxu0
        %v501 = vadd.f32 0.0, %v500
        %502 = vmatmul.bf16.gmra.mxu0 %v323
        %v503 = vpop.f32.mrf.mxu0
        %v504 = vadd.f32 0.0, %v503
        %v505 = vpop.f32.mrf.mxu0
        %v506 = vadd.f32 0.0, %v505
        %507 = vdwg.mxu0
        %v508 = vmax.f32 %v340, %v429
        %509 = vmax.xlane.f32.xlu0 %v508
        %v510 = vpop.xlane.xlu0 %509
        %v511 = vmax.f32 %v342, %v431
        %512 = vmax.xlane.f32.xlu0 %v511
        %v513 = vpop.xlane.xlu0 %512
        %v514 = vmax.f32 %v345, %v434
        %515 = vmax.xlane.f32.xlu0 %v514
        %v516 = vpop.xlane.xlu0 %515
        %v517 = vmax.f32 %v347, %v436
        %518 = vmax.xlane.f32.xlu0 %v517
        %v519 = vpop.xlane.xlu0 %518
        %v520 = vmax.f32 %v350, %v439
        %521 = vmax.xlane.f32.xlu0 %v520
        %v522 = vpop.xlane.xlu0 %521
        %v523 = vmax.f32 %v352, %v441
        %524 = vmax.xlane.f32.xlu0 %v523
        %v525 = vpop.xlane.xlu0 %524
        %v526 = vmax.f32 %v355, %v444
        %527 = vmax.xlane.f32.xlu0 %v526
        %v528 = vpop.xlane.xlu0 %527
        %v529 = vmax.f32 %v357, %v446
        %530 = vmax.xlane.f32.xlu0 %v529
        %v531 = vpop.xlane.xlu0 %530
        %v532 = vmax.f32 %v360, %v449
        %533 = vmax.xlane.f32.xlu0 %v532
        %v534 = vpop.xlane.xlu0 %533
        %v535 = vmax.f32 %v362, %v451
        %536 = vmax.xlane.f32.xlu0 %v535
        %v537 = vpop.xlane.xlu0 %536
        %v538 = vmax.f32 %v365, %v454
        %539 = vmax.xlane.f32.xlu0 %v538
        %v540 = vpop.xlane.xlu0 %539
        %v541 = vmax.f32 %v367, %v456
        %542 = vmax.xlane.f32.xlu0 %v541
        %v543 = vpop.xlane.xlu0 %542
        %v544 = vmax.f32 %v370, %v459
        %545 = vmax.xlane.f32.xlu0 %v544
        %v546 = vpop.xlane.xlu0 %545
        %v547 = vmax.f32 %v372, %v461
        %548 = vmax.xlane.f32.xlu0 %v547
        %v549 = vpop.xlane.xlu0 %548
        %v550 = vmax.f32 %v375, %v464
        %551 = vmax.xlane.f32.xlu0 %v550
        %v552 = vpop.xlane.xlu0 %551
        %v553 = vmax.f32 %v377, %v466
        %554 = vmax.xlane.f32.xlu0 %v553
        %v555 = vpop.xlane.xlu0 %554
        %v556 = vmax.f32 %v380, %v469
        %557 = vmax.xlane.f32.xlu0 %v556
        %v558 = vpop.xlane.xlu0 %557
        %v559 = vmax.f32 %v382, %v471
        %560 = vmax.xlane.f32.xlu0 %v559
        %v561 = vpop.xlane.xlu0 %560
        %v562 = vmax.f32 %v385, %v474
        %563 = vmax.xlane.f32.xlu0 %v562
        %v564 = vpop.xlane.xlu0 %563
        %v565 = vmax.f32 %v387, %v476
        %566 = vmax.xlane.f32.xlu0 %v565
        %v567 = vpop.xlane.xlu0 %566
        %v568 = vmax.f32 %v390, %v479
        %569 = vmax.xlane.f32.xlu0 %v568
        %v570 = vpop.xlane.xlu0 %569
        %v571 = vmax.f32 %v392, %v481
        %572 = vmax.xlane.f32.xlu0 %v571
        %v573 = vpop.xlane.xlu0 %572
        %v574 = vmax.f32 %v395, %v484
        %575 = vmax.xlane.f32.xlu0 %v574
        %v576 = vpop.xlane.xlu0 %575
        %v577 = vmax.f32 %v397, %v486
        %578 = vmax.xlane.f32.xlu0 %v577
        %v579 = vpop.xlane.xlu0 %578
        %v580 = vmax.f32 %v400, %v489
        %581 = vmax.xlane.f32.xlu0 %v580
        %v582 = vpop.xlane.xlu0 %581
        %v583 = vmax.f32 %v402, %v491
        %584 = vmax.xlane.f32.xlu0 %v583
        %v585 = vpop.xlane.xlu0 %584
        %v586 = vmax.f32 %v405, %v494
        %587 = vmax.xlane.f32.xlu0 %v586
        %v588 = vpop.xlane.xlu0 %587
        %v589 = vmax.f32 %v407, %v496
        %590 = vmax.xlane.f32.xlu0 %v589
        %v591 = vpop.xlane.xlu0 %590
        %v592 = vmax.f32 %v410, %v499
        %593 = vmax.xlane.f32.xlu0 %v592
        %v594 = vpop.xlane.xlu0 %593
        %v595 = vmax.f32 %v412, %v501
        %596 = vmax.xlane.f32.xlu0 %v595
        %v597 = vpop.xlane.xlu0 %596
        %v598 = vmax.f32 %v415, %v504
        %599 = vmax.xlane.f32.xlu0 %v598
        %v600 = vpop.xlane.xlu0 %599
        %v601 = vmax.f32 %v417, %v506
        %602 = vmax.xlane.f32.xlu0 %v601
        %v603 = vpop.xlane.xlu0 %602
        %v604 = vsub.f32 %v340, %v510
        %v605 = vsub.f32 %v429, %v510
        %v606 = vsub.f32 %v342, %v513
        %v607 = vsub.f32 %v431, %v513
        %v608 = vsub.f32 %v345, %v516
        %v609 = vsub.f32 %v434, %v516
        %v610 = vsub.f32 %v347, %v519
        %v611 = vsub.f32 %v436, %v519
        %v612 = vsub.f32 %v350, %v522
        %v613 = vsub.f32 %v439, %v522
        %v614 = vsub.f32 %v352, %v525
        %v615 = vsub.f32 %v441, %v525
        %v616 = vsub.f32 %v355, %v528
        %v617 = vsub.f32 %v444, %v528
        %v618 = vsub.f32 %v357, %v531
        %v619 = vsub.f32 %v446, %v531
        %v620 = vsub.f32 %v360, %v534
        %v621 = vsub.f32 %v449, %v534
        %v622 = vsub.f32 %v362, %v537
        %v623 = vsub.f32 %v451, %v537
        %v624 = vsub.f32 %v365, %v540
        %v625 = vsub.f32 %v454, %v540
        %v626 = vsub.f32 %v367, %v543
        %v627 = vsub.f32 %v456, %v543
        %v628 = vsub.f32 %v370, %v546
        %v629 = vsub.f32 %v459, %v546
        %v630 = vsub.f32 %v372, %v549
        %v631 = vsub.f32 %v461, %v549
        %v632 = vsub.f32 %v375, %v552
        %v633 = vsub.f32 %v464, %v552
        %v634 = vsub.f32 %v377, %v555
        %v635 = vsub.f32 %v466, %v555
        %v636 = vsub.f32 %v380, %v558
        %v637 = vsub.f32 %v469, %v558
        %v638 = vsub.f32 %v382, %v561
        %v639 = vsub.f32 %v471, %v561
        %v640 = vsub.f32 %v385, %v564
        %v641 = vsub.f32 %v474, %v564
        %v642 = vsub.f32 %v387, %v567
        %v643 = vsub.f32 %v476, %v567
        %v644 = vsub.f32 %v390, %v570
        %v645 = vsub.f32 %v479, %v570
        %v646 = vsub.f32 %v392, %v573
        %v647 = vsub.f32 %v481, %v573
        %v648 = vsub.f32 %v395, %v576
        %v649 = vsub.f32 %v484, %v576
        %v650 = vsub.f32 %v397, %v579
        %v651 = vsub.f32 %v486, %v579
        %v652 = vsub.f32 %v400, %v582
        %v653 = vsub.f32 %v489, %v582
        %v654 = vsub.f32 %v402, %v585
        %v655 = vsub.f32 %v491, %v585
        %v656 = vsub.f32 %v405, %v588
        %v657 = vsub.f32 %v494, %v588
        %v658 = vsub.f32 %v407, %v591
        %v659 = vsub.f32 %v496, %v591
        %v660 = vsub.f32 %v410, %v594
        %v661 = vsub.f32 %v499, %v594
        %v662 = vsub.f32 %v412, %v597
        %v663 = vsub.f32 %v501, %v597
        %v664 = vsub.f32 %v415, %v600
        %v665 = vsub.f32 %v504, %v600
        %v666 = vsub.f32 %v417, %v603
        %v667 = vsub.f32 %v506, %v603
        %v668 = vmul.f32 %v604, 1.442695
        %v669 = vpow.pop %v668
        %v670 = vmul.f32 %v605, 1.442695
        %v671 = vpow.pop %v670
        %v672 = vmul.f32 %v606, 1.442695
        %v673 = vpow.pop %v672
        %v674 = vmul.f32 %v607, 1.442695
        %v675 = vpow.pop %v674
        %v676 = vmul.f32 %v608, 1.442695
        %v677 = vpow.pop %v676
        %v678 = vmul.f32 %v609, 1.442695
        %v679 = vpow.pop %v678
        %v680 = vmul.f32 %v610, 1.442695
        %v681 = vpow.pop %v680
        %v682 = vmul.f32 %v611, 1.442695
        %v683 = vpow.pop %v682
        %v684 = vmul.f32 %v612, 1.442695
        %v685 = vpow.pop %v684
        %v686 = vmul.f32 %v613, 1.442695
        %v687 = vpow.pop %v686
        %v688 = vmul.f32 %v614, 1.442695
        %v689 = vpow.pop %v688
        %v690 = vmul.f32 %v615, 1.442695
        %v691 = vpow.pop %v690
        %v692 = vmul.f32 %v616, 1.442695
        %v693 = vpow.pop %v692
        %v694 = vmul.f32 %v617, 1.442695
        %v695 = vpow.pop %v694
        %v696 = vmul.f32 %v618, 1.442695
        %v697 = vpow.pop %v696
        %v698 = vmul.f32 %v619, 1.442695
        %v699 = vpow.pop %v698
        %v700 = vmul.f32 %v620, 1.442695
        %v701 = vpow.pop %v700
        %v702 = vmul.f32 %v621, 1.442695
        %v703 = vpow.pop %v702
        %v704 = vmul.f32 %v622, 1.442695
        %v705 = vpow.pop %v704
        %v706 = vmul.f32 %v623, 1.442695
        %v707 = vpow.pop %v706
        %v708 = vmul.f32 %v624, 1.442695
        %v709 = vpow.pop %v708
        %v710 = vmul.f32 %v625, 1.442695
        %v711 = vpow.pop %v710
        %v712 = vmul.f32 %v626, 1.442695
        %v713 = vpow.pop %v712
        %v714 = vmul.f32 %v627, 1.442695
        %v715 = vpow.pop %v714
        %v716 = vmul.f32 %v628, 1.442695
        %v717 = vpow.pop %v716
        %v718 = vmul.f32 %v629, 1.442695
        %v719 = vpow.pop %v718
        %v720 = vmul.f32 %v630, 1.442695
        %v721 = vpow.pop %v720
        %v722 = vmul.f32 %v631, 1.442695
        %v723 = vpow.pop %v722
        %v724 = vmul.f32 %v632, 1.442695
        %v725 = vpow.pop %v724
        %v726 = vmul.f32 %v633, 1.442695
        %v727 = vpow.pop %v726
        %v728 = vmul.f32 %v634, 1.442695
        %v729 = vpow.pop %v728
        %v730 = vmul.f32 %v635, 1.442695
        %v731 = vpow.pop %v730
        %v732 = vmul.f32 %v636, 1.442695
        %v733 = vpow.pop %v732
        %v734 = vmul.f32 %v637, 1.442695
        %v735 = vpow.pop %v734
        %v736 = vmul.f32 %v638, 1.442695
        %v737 = vpow.pop %v736
        %v738 = vmul.f32 %v639, 1.442695
        %v739 = vpow.pop %v738
        %v740 = vmul.f32 %v640, 1.442695
        %v741 = vpow.pop %v740
        %v742 = vmul.f32 %v641, 1.442695
        %v743 = vpow.pop %v742
        %v744 = vmul.f32 %v642, 1.442695
        %v745 = vpow.pop %v744
        %v746 = vmul.f32 %v643, 1.442695
        %v747 = vpow.pop %v746
        %v748 = vmul.f32 %v644, 1.442695
        %v749 = vpow.pop %v748
        %v750 = vmul.f32 %v645, 1.442695
        %v751 = vpow.pop %v750
        %v752 = vmul.f32 %v646, 1.442695
        %v753 = vpow.pop %v752
        %v754 = vmul.f32 %v647, 1.442695
        %v755 = vpow.pop %v754
        %v756 = vmul.f32 %v648, 1.442695
        %v757 = vpow.pop %v756
        %v758 = vmul.f32 %v649, 1.442695
        %v759 = vpow.pop %v758
        %v760 = vmul.f32 %v650, 1.442695
        %v761 = vpow.pop %v760
        %v762 = vmul.f32 %v651, 1.442695
        %v763 = vpow.pop %v762
        %v764 = vmul.f32 %v652, 1.442695
        %v765 = vpow.pop %v764
        %v766 = vmul.f32 %v653, 1.442695
        %v767 = vpow.pop %v766
        %v768 = vmul.f32 %v654, 1.442695
        %v769 = vpow.pop %v768
        %v770 = vmul.f32 %v655, 1.442695
        %v771 = vpow.pop %v770
        %v772 = vmul.f32 %v656, 1.442695
        %v773 = vpow.pop %v772
        %v774 = vmul.f32 %v657, 1.442695
        %v775 = vpow.pop %v774
        %v776 = vmul.f32 %v658, 1.442695
        %v777 = vpow.pop %v776
        %v778 = vmul.f32 %v659, 1.442695
        %v779 = vpow.pop %v778
        %v780 = vmul.f32 %v660, 1.442695
        %v781 = vpow.pop %v780
        %v782 = vmul.f32 %v661, 1.442695
        %v783 = vpow.pop %v782
        %v784 = vmul.f32 %v662, 1.442695
        %v785 = vpow.pop %v784
        %v786 = vmul.f32 %v663, 1.442695
        %v787 = vpow.pop %v786
        %v788 = vmul.f32 %v664, 1.442695
        %v789 = vpow.pop %v788
        %v790 = vmul.f32 %v665, 1.442695
        %v791 = vpow.pop %v790
        %v792 = vmul.f32 %v666, 1.442695
        %v793 = vpow.pop %v792
        %v794 = vmul.f32 %v667, 1.442695
        %v795 = vpow.pop %v794
        %v796 = vadd.f32 %v669, %v671
        %797 = vadd.xlane.f32.xlu0 %v796
        %v798 = vpop.xlane.xlu0 %797
        %v799 = vadd.f32 %v673, %v675
        %800 = vadd.xlane.f32.xlu0 %v799
        %v801 = vpop.xlane.xlu0 %800
        %v802 = vadd.f32 %v677, %v679
        %803 = vadd.xlane.f32.xlu0 %v802
        %v804 = vpop.xlane.xlu0 %803
        %v805 = vadd.f32 %v681, %v683
        %806 = vadd.xlane.f32.xlu0 %v805
        %v807 = vpop.xlane.xlu0 %806
        %v808 = vadd.f32 %v685, %v687
        %809 = vadd.xlane.f32.xlu0 %v808
        %v810 = vpop.xlane.xlu0 %809
        %v811 = vadd.f32 %v689, %v691
        %812 = vadd.xlane.f32.xlu0 %v811
        %v813 = vpop.xlane.xlu0 %812
        %v814 = vadd.f32 %v693, %v695
        %815 = vadd.xlane.f32.xlu0 %v814
        %v816 = vpop.xlane.xlu0 %815
        %v817 = vadd.f32 %v697, %v699
        %818 = vadd.xlane.f32.xlu0 %v817
        %v819 = vpop.xlane.xlu0 %818
        %v820 = vadd.f32 %v701, %v703
        %821 = vadd.xlane.f32.xlu0 %v820
        %v822 = vpop.xlane.xlu0 %821
        %v823 = vadd.f32 %v705, %v707
        %824 = vadd.xlane.f32.xlu0 %v823
        %v825 = vpop.xlane.xlu0 %824
        %v826 = vadd.f32 %v709, %v711
        %827 = vadd.xlane.f32.xlu0 %v826
        %v828 = vpop.xlane.xlu0 %827
        %v829 = vadd.f32 %v713, %v715
        %830 = vadd.xlane.f32.xlu0 %v829
        %v831 = vpop.xlane.xlu0 %830
        %v832 = vadd.f32 %v717, %v719
        %833 = vadd.xlane.f32.xlu0 %v832
        %v834 = vpop.xlane.xlu0 %833
        %v835 = vadd.f32 %v721, %v723
        %836 = vadd.xlane.f32.xlu0 %v835
        %v837 = vpop.xlane.xlu0 %836
        %v838 = vadd.f32 %v725, %v727
        %839 = vadd.xlane.f32.xlu0 %v838
        %v840 = vpop.xlane.xlu0 %839
        %v841 = vadd.f32 %v729, %v731
        %842 = vadd.xlane.f32.xlu0 %v841
        %v843 = vpop.xlane.xlu0 %842
        %v844 = vadd.f32 %v733, %v735
        %845 = vadd.xlane.f32.xlu0 %v844
        %v846 = vpop.xlane.xlu0 %845
        %v847 = vadd.f32 %v737, %v739
        %848 = vadd.xlane.f32.xlu0 %v847
        %v849 = vpop.xlane.xlu0 %848
        %v850 = vadd.f32 %v741, %v743
        %851 = vadd.xlane.f32.xlu0 %v850
        %v852 = vpop.xlane.xlu0 %851
        %v853 = vadd.f32 %v745, %v747
        %854 = vadd.xlane.f32.xlu0 %v853
        %v855 = vpop.xlane.xlu0 %854
        %v856 = vadd.f32 %v749, %v751
        %857 = vadd.xlane.f32.xlu0 %v856
        %v858 = vpop.xlane.xlu0 %857
        %v859 = vadd.f32 %v753, %v755
        %860 = vadd.xlane.f32.xlu0 %v859
        %v861 = vpop.xlane.xlu0 %860
        %v862 = vadd.f32 %v757, %v759
        %863 = vadd.xlane.f32.xlu0 %v862
        %v864 = vpop.xlane.xlu0 %863
        %v865 = vadd.f32 %v761, %v763
        %866 = vadd.xlane.f32.xlu0 %v865
        %v867 = vpop.xlane.xlu0 %866
        %v868 = vadd.f32 %v765, %v767
        %869 = vadd.xlane.f32.xlu0 %v868
        %v870 = vpop.xlane.xlu0 %869
        %v871 = vadd.f32 %v769, %v771
        %872 = vadd.xlane.f32.xlu0 %v871
        %v873 = vpop.xlane.xlu0 %872
        %v874 = vadd.f32 %v773, %v775
        %875 = vadd.xlane.f32.xlu0 %v874
        %v876 = vpop.xlane.xlu0 %875
        %v877 = vadd.f32 %v777, %v779
        %878 = vadd.xlane.f32.xlu0 %v877
        %v879 = vpop.xlane.xlu0 %878
        %v880 = vadd.f32 %v781, %v783
        %881 = vadd.xlane.f32.xlu0 %v880
        %v882 = vpop.xlane.xlu0 %881
        %v883 = vadd.f32 %v785, %v787
        %884 = vadd.xlane.f32.xlu0 %v883
        %v885 = vpop.xlane.xlu0 %884
        %v886 = vadd.f32 %v789, %v791
        %887 = vadd.xlane.f32.xlu0 %v886
        %v888 = vpop.xlane.xlu0 %887
        %v889 = vadd.f32 %v793, %v795
        %890 = vadd.xlane.f32.xlu0 %v889
        %v891 = vpop.xlane.xlu0 %890
        %v892 = vrcp.pop %v798
        %v893 = vrcp.pop %v801
        %v894 = vrcp.pop %v804
        %v895 = vrcp.pop %v807
        %v896 = vrcp.pop %v810
        %v897 = vrcp.pop %v813
        %v898 = vrcp.pop %v816
        %v899 = vrcp.pop %v819
        %v900 = vrcp.pop %v822
        %v901 = vrcp.pop %v825
        %v902 = vrcp.pop %v828
        %v903 = vrcp.pop %v831
        %v904 = vrcp.pop %v834
        %v905 = vrcp.pop %v837
        %v906 = vrcp.pop %v840
        %v907 = vrcp.pop %v843
        %v908 = vrcp.pop %v846
        %v909 = vrcp.pop %v849
        %v910 = vrcp.pop %v852
        %v911 = vrcp.pop %v855
        %v912 = vrcp.pop %v858
        %v913 = vrcp.pop %v861
        %v914 = vrcp.pop %v864
        %v915 = vrcp.pop %v867
        %v916 = vrcp.pop %v870
        %v917 = vrcp.pop %v873
        %v918 = vrcp.pop %v876
        %v919 = vrcp.pop %v879
        %v920 = vrcp.pop %v882
        %v921 = vrcp.pop %v885
        %v922 = vrcp.pop %v888
        %v923 = vrcp.pop %v891
        %v924 = vpack.c.bf16 %v673, %v669
        %v925 = vpack.c.bf16 %v675, %v671
        %v926 = vpack.c.bf16 %v681, %v677
        %v927 = vpack.c.bf16 %v683, %v679
        %v928 = vpack.c.bf16 %v689, %v685
        %v929 = vpack.c.bf16 %v691, %v687
        %v930 = vpack.c.bf16 %v697, %v693
        %v931 = vpack.c.bf16 %v699, %v695
        %v932 = vpack.c.bf16 %v705, %v701
        %v933 = vpack.c.bf16 %v707, %v703
        %v934 = vpack.c.bf16 %v713, %v709
        %v935 = vpack.c.bf16 %v715, %v711
        %v936 = vpack.c.bf16 %v721, %v717
        %v937 = vpack.c.bf16 %v723, %v719
        %v938 = vpack.c.bf16 %v729, %v725
        %v939 = vpack.c.bf16 %v731, %v727
        %v940 = vpack.c.bf16 %v737, %v733
        %v941 = vpack.c.bf16 %v739, %v735
        %v942 = vpack.c.bf16 %v745, %v741
        %v943 = vpack.c.bf16 %v747, %v743
        %v944 = vpack.c.bf16 %v753, %v749
        %v945 = vpack.c.bf16 %v755, %v751
        %v946 = vpack.c.bf16 %v761, %v757
        %v947 = vpack.c.bf16 %v763, %v759
        %v948 = vpack.c.bf16 %v769, %v765
        %v949 = vpack.c.bf16 %v771, %v767
        %v950 = vpack.c.bf16 %v777, %v773
        %v951 = vpack.c.bf16 %v779, %v775
        %v952 = vpack.c.bf16 %v785, %v781
        %v953 = vpack.c.bf16 %v787, %v783
        %v954 = vpack.c.bf16 %v793, %v789
        %v955 = vpack.c.bf16 %v795, %v791
        %v956 = vld [vmem:[%s186] sm:$0x3]
        %957 = vst [vmem:[#allocation1] ss:$4 sm:$0xff] %v240
        %v958 = vld.sshfl [vmem:[#allocation1] sm:$0xff pattern:$0x73625140]
        %v959 = vld.sshfl [vmem:[#allocation1 + $0x8] sm:$0xff pattern:$0x73625140]
        %v961 = vsel %vm276, %v956, 0
        %v963 = vsel %vm325, %v958, 0
        %v965 = vsel %vm325, %v959, 0
        %967 = vmatpush.bf16.msra.mxu0 0
        %968 = vmatpush.bf16.msra.mxu0 0
        %969 = vmatpush.bf16.msra.mxu0 0
        %970 = vmatpush.bf16.msra.mxu0 0
        %971 = vmatpush.bf16.msra.mxu0 0
        %972 = vmatpush.bf16.msra.mxu0 0
        %973 = vmatpush.bf16.msra.mxu0 0
        %974 = vmatpush.bf16.msra.mxu0 %v963
        %975 = vmatmul.bf16.gmra.mxu0 %v961
        %v976 = vpop.f32.mrf.mxu0
        %v977 = vadd.f32 0.0, %v976
        %v978 = vpop.f32.mrf.mxu0
        %979 = vdwg.mxu0
        %980 = vmatpush.bf16.msra.mxu0 0
        %981 = vmatpush.bf16.msra.mxu0 0
        %982 = vmatpush.bf16.msra.mxu0 0
        %983 = vmatpush.bf16.msra.mxu0 0
        %984 = vmatpush.bf16.msra.mxu0 0
        %985 = vmatpush.bf16.msra.mxu0 0
        %986 = vmatpush.bf16.msra.mxu0 0
        %987 = vmatpush.bf16.msra.mxu0 %v965
        %988 = vmatmul.bf16.gmra.mxu0 %v961
        %v989 = vpop.f32.mrf.mxu0
        %v990 = vadd.f32 0.0, %v989
        %v991 = vpop.f32.mrf.mxu0
        %992 = vdwg.mxu0
        %v1025 = vlaneseq
        %v1026 = vand.u32 %v1025, 127
        %v1027 = vperm.slane %v892, %v1026
        %v1028 = vadd.s32 %v1026, 4294967288
        %v1029 = vperm.slane %v893, %v1028
        %vm1030 = vcmask 130112
        %v1031 = vsel %vm1030, %v1029, %v1027
        %v1032 = vadd.s32 %v1026, 4294967280
        %v1033 = vperm.slane %v894, %v1032
        %vm1034 = vcmask 195712
        %v1035 = vsel %vm1034, %v1033, %v1031
        %v1036 = vadd.s32 %v1026, 4294967272
        %v1037 = vperm.slane %v895, %v1036
        %vm1038 = vcmask 261312
        %v1039 = vsel %vm1038, %v1037, %v1035
        %v1040 = vadd.s32 %v1026, 4294967264
        %v1041 = vperm.slane %v896, %v1040
        %vm1042 = vcmask 326912
        %v1043 = vsel %vm1042, %v1041, %v1039
        %v1044 = vadd.s32 %v1026, 4294967256
        %v1045 = vperm.slane %v897, %v1044
        %vm1046 = vcmask 392512
        %v1047 = vsel %vm1046, %v1045, %v1043
        %v1048 = vadd.s32 %v1026, 4294967248
        %v1049 = vperm.slane %v898, %v1048
        %vm1050 = vcmask 458112
        %v1051 = vsel %vm1050, %v1049, %v1047
        %v1052 = vadd.s32 %v1026, 4294967240
        %v1053 = vperm.slane %v899, %v1052
        %vm1054 = vcmask 523712
        %v1055 = vsel %vm1054, %v1053, %v1051
        %v1056 = vadd.s32 %v1026, 4294967232
        %v1057 = vperm.slane %v900, %v1056
        %vm1058 = vcmask 589312
        %v1059 = vsel %vm1058, %v1057, %v1055
        %v1060 = vadd.s32 %v1026, 4294967224
        %v1061 = vperm.slane %v901, %v1060
        %vm1062 = vcmask 654912
        %v1063 = vsel %vm1062, %v1061, %v1059
        %v1064 = vadd.s32 %v1026, 4294967216
        %v1065 = vperm.slane %v902, %v1064
        %vm1066 = vcmask 720512
        %v1067 = vsel %vm1066, %v1065, %v1063
        %v1068 = vadd.s32 %v1026, 4294967208
        %v1069 = vperm.slane %v903, %v1068
        %vm1070 = vcmask 786112
        %v1071 = vsel %vm1070, %v1069, %v1067
        %v1072 = vadd.s32 %v1026, 4294967200
        %v1073 = vperm.slane %v904, %v1072
        %vm1074 = vcmask 851712
        %v1075 = vsel %vm1074, %v1073, %v1071
        %v1076 = vadd.s32 %v1026, 4294967192
        %v1077 = vperm.slane %v905, %v1076
        %vm1078 = vcmask 917312
        %v1079 = vsel %vm1078, %v1077, %v1075
        %v1080 = vadd.s32 %v1026, 4294967184
        %v1081 = vperm.slane %v906, %v1080
        %vm1082 = vcmask 982912
        %v1083 = vsel %vm1082, %v1081, %v1079
        %v1084 = vadd.s32 %v1026, 4294967176
        %v1085 = vperm.slane %v907, %v1084
        %vm1086 = vcmask 1048512
        %v1087 = vsel %vm1086, %v1085, %v1083
        %v1088 = vperm.slane %v908, %v1026
        %v1089 = vperm.slane %v909, %v1028
        %v1090 = vsel %vm1030, %v1089, %v1088
        %v1091 = vperm.slane %v910, %v1032
        %v1092 = vsel %vm1034, %v1091, %v1090
        %v1093 = vperm.slane %v911, %v1036
        %v1094 = vsel %vm1038, %v1093, %v1092
        %v1095 = vperm.slane %v912, %v1040
        %v1096 = vsel %vm1042, %v1095, %v1094
        %v1097 = vperm.slane %v913, %v1044
        %v1098 = vsel %vm1046, %v1097, %v1096
        %v1099 = vperm.slane %v914, %v1048
        %v1100 = vsel %vm1050, %v1099, %v1098
        %v1101 = vperm.slane %v915, %v1052
        %v1102 = vsel %vm1054, %v1101, %v1100
        %v1103 = vperm.slane %v916, %v1056
        %v1104 = vsel %vm1058, %v1103, %v1102
        %v1105 = vperm.slane %v917, %v1060
        %v1106 = vsel %vm1062, %v1105, %v1104
        %v1107 = vperm.slane %v918, %v1064
        %v1108 = vsel %vm1066, %v1107, %v1106
        %v1109 = vperm.slane %v919, %v1068
        %v1110 = vsel %vm1070, %v1109, %v1108
        %v1111 = vperm.slane %v920, %v1072
        %v1112 = vsel %vm1074, %v1111, %v1110
        %v1113 = vperm.slane %v921, %v1076
        %v1114 = vsel %vm1078, %v1113, %v1112
        %v1115 = vperm.slane %v922, %v1080
        %v1116 = vsel %vm1082, %v1115, %v1114
        %v1117 = vperm.slane %v923, %v1084
        %v1118 = vsel %vm1086, %v1117, %v1116
        %vm1119 = vcmask 1042434
        %v1120 = vsel %vm1119, %v1087, %v1087
        %vm1121 = vcmask 1043459
        %v1122 = vsel %vm1121, %v1087, %v1120
        %v1123 = vsel %vm1119, %v1118, %v1118
        %v1124 = vsel %vm1121, %v1118, %v1123
        %v1127 = vmul.f32 %v977, %v1122
        %v1128 = vmul.f32 %v990, %v1124
        %v1129 = vpack.c.bf16 %v1127, %v1127
        %v1130 = vpack.c.bf16 %v1128, %v1128
        %v1131 = vld [vmem:[#allocation3] sm:$0xff]
        %1132 = vmatpush.bf16.msra.mxu0 %v938
        %1133 = vmatpush.bf16.msra.mxu0 %v936
        %1134 = vmatpush.bf16.msra.mxu0 %v934
        %1135 = vmatpush.bf16.msra.mxu0 %v932
        %1136 = vmatpush.bf16.msra.mxu0 %v930
        %1137 = vmatpush.bf16.msra.mxu0 %v928
        %1138 = vmatpush.bf16.msra.mxu0 %v926
        %1139 = vmatpush.bf16.msra.mxu0 %v924
        %1140 = vmatmul.bf16.gmra.mxu0 %v1129
        %v1141 = vpop.f32.mrf.mxu0
        %v1142 = vadd.f32 0.0, %v1141
        %v1143 = vpop.f32.mrf.mxu0
        %1144 = vdwg.mxu0
        %1145 = vmatpush.bf16.msra.mxu0 %v954
        %1146 = vmatpush.bf16.msra.mxu0 %v952
        %1147 = vmatpush.bf16.msra.mxu0 %v950
        %1148 = vmatpush.bf16.msra.mxu0 %v948
        %1149 = vmatpush.bf16.msra.mxu0 %v946
        %1150 = vmatpush.bf16.msra.mxu0 %v944
        %1151 = vmatpush.bf16.msra.mxu0 %v942
        %1152 = vmatpush.bf16.msra.mxu0 %v940
        %1153 = vmatmul.bf16.gmra.mxu0 %v1130
        %v1154 = vpop.f32.mrf.mxu0
        %v1155 = vadd.f32 %v1142, %v1154
        %v1156 = vpop.f32.mrf.mxu0
        %1157 = vdwg.mxu0
        %1158 = vmatpush.bf16.msra.mxu0 %v939
        %1159 = vmatpush.bf16.msra.mxu0 %v937
        %1160 = vmatpush.bf16.msra.mxu0 %v935
        %1161 = vmatpush.bf16.msra.mxu0 %v933
        %1162 = vmatpush.bf16.msra.mxu0 %v931
        %1163 = vmatpush.bf16.msra.mxu0 %v929
        %1164 = vmatpush.bf16.msra.mxu0 %v927
        %1165 = vmatpush.bf16.msra.mxu0 %v925
        %1166 = vmatmul.bf16.gmra.mxu0 %v1129
        %v1167 = vpop.f32.mrf.mxu0
        %v1168 = vadd.f32 0.0, %v1167
        %v1169 = vpop.f32.mrf.mxu0
        %1170 = vdwg.mxu0
        %1171 = vmatpush.bf16.msra.mxu0 %v955
        %1172 = vmatpush.bf16.msra.mxu0 %v953
        %1173 = vmatpush.bf16.msra.mxu0 %v951
        %1174 = vmatpush.bf16.msra.mxu0 %v949
        %1175 = vmatpush.bf16.msra.mxu0 %v947
        %1176 = vmatpush.bf16.msra.mxu0 %v945
        %1177 = vmatpush.bf16.msra.mxu0 %v943
        %1178 = vmatpush.bf16.msra.mxu0 %v941
        %1179 = vmatmul.bf16.gmra.mxu0 %v1130
        %v1180 = vpop.f32.mrf.mxu0
        %v1181 = vadd.f32 %v1168, %v1180
        %v1182 = vpop.f32.mrf.mxu0
        %1183 = vdwg.mxu0
        %v1186 = vrot.slane %v1181, 4
        %vm1187 = vcmask 1043456
        %v1188 = vsel %vm1187, %v1155, %v1186
        %v1190 = vadd.f32 %v1131, %v1188
        %1191 = vst [vmem:[#allocation3] sm:$0xff] %v1190
        // Predicated region
        $region41: #{tpu_custom_call.1} parent=27 // pred_check
          %p1192 = pneg %p214
        $region42: #{tpu_custom_call.1} parent=27 // pred_check_branch
          %1194 = sbr.rel (%p1192) target = $region44
        $region43: #{tpu_custom_call.1} parent=27 // pred_region
          %v1195 = vld [vmem:[#allocation3] sm:$0xff]
          %v1196 = vld [vmem:[%s176] sm:$0xff]
          %v1197 = vadd.f32 %v1195, %v1196
          %1198 = vst [vmem:[%s212] sm:$0xff] %v1197
        $region44: #{tpu_custom_call.1} parent=27 // pred_fallthru
          _
        %s1199 = sand.u32 %s94, 1
        %s1200 = scalar_lea.sflag [#allocation6], %s1199
        %s1201 = sand.u32 %s94, 1
        %s1202 = smul.addr %s1201, 8
        %s1203 = scalar_lea.vmem [#allocation9], %s1202
        // Predicated region
        $region45: #{tpu_custom_call.1} parent=27 // pred_check
          %p1204 = pneg %p104
        $region46: #{tpu_custom_call.1} parent=27 // pred_check_branch
          %1206 = sbr.rel (%p1204) target = $region48
        $region47: #{tpu_custom_call.1} parent=27 // pred_region
          %1208 = vsyncadd %s1200, 0
          %s1209 = smul.addr %s26, 2
          %s1210 = smul.addr %s1209, 4
          %s1211 = scalar_lea.hbm %s2, %s1210
          %s1213 = sshll.u32 %s1203, 4
          %s1214 = int_to_ptr.vmem [resolvable:$true] %s1213
          %s1215 = sshll.u32 %s1211, 4
          %s1216 = int_to_ptr.hbm [resolvable:$true] %s1215
          %1218 = dma.vmem_to_hbm [thread:$0]  %s1214, 128, %s1216, %s1200
        $region48: #{tpu_custom_call.1} parent=27 // pred_fallthru
          _
      $region28: #{tpu_custom_call.1} parent=5 // pred_fallthru
        _
      %p1219 = scmp.le.s32.totalorder 2, %s17
      // Predicated region
      $region49: #{tpu_custom_call.1} parent=5 // pred_check
        %p1220 = pneg %p1219
      $region50: #{tpu_custom_call.1} parent=5 // pred_check_branch
        %1222 = sbr.rel (%p1220) target = $region52
      $region51: #{tpu_custom_call.1} parent=5 // pred_region
        %s1223 = ssub.s32 %s17, 2
        // Predicated region
        $region53: #{tpu_custom_call.1} parent=51 // pred_check
          %p1224 = pneg %p110
        $region54: #{tpu_custom_call.1} parent=51 // pred_check_branch
          %1226 = sbr.rel (%p1224) target = $region56
        $region55: #{tpu_custom_call.1} parent=51 // pred_region
          %s1227 = sand.u32 %s95, 1
          %s1228 = scalar_lea.sflag [#allocation6], %s1227
          %s1229 = sand.u32 %s95, 1
          %s1230 = smul.addr %s1229, 8
          %s1231 = scalar_lea.vmem [#allocation9], %s1230
          %1233 = dma.done %s1228, 128
        $region56: #{tpu_custom_call.1} parent=51 // pred_fallthru
          _
      $region52: #{tpu_custom_call.1} parent=5 // pred_fallthru
        _
    $region6: #{tpu_custom_call.1} parent=1 // loop_footer
      %s21 = sadd.s32 1, %s17
    $region7: #{tpu_custom_call.1} parent=1 // loop_footer_branch
      %16 = sbr.rel target = $region3
    $region8: #{tpu_custom_call.1} parent=1 // loop_exit
      _
    %1234 = vsyncpa [#allocation5], 1
    %s1235 = scalar_lea.sflag [#allocation5], 1
    %1236 = vsyncpa %s1235, 1
    %1237 = vsyncpa [#allocation8], 1
    %s1238 = scalar_lea.sflag [#allocation8], 1
    %1239 = vsyncpa %s1238, 1
    %1240 = vsyncpa [#allocation6], 1
    %s1241 = scalar_lea.sflag [#allocation6], 1
    %1242 = vsyncpa %s1241, 1

</llo_original>
